<compile_context>
chip_gen: v5e
topology: v5e:2x2
jax: 0.10.0
libtpu: 0.0.40
codegen_flags: <defaults>
</compile_context>

<pallas_src>
import math

import jax
import jax.numpy as jnp
from jax import lax
from jax.experimental import pallas as pl
from jax.experimental.pallas import tpu as pltpu


def _round_up(a, m):
    return (a + m - 1) // m * m


_MASK_VAL = -1e30  # effectively -inf after softmax; finite so no inf-inf NaNs


def _default_exp_dtype(matmul_dtype):
    """bf16 exp relieves the single EUP on v6e/v7x; keep f32 elsewhere."""
    if matmul_dtype != jnp.bfloat16:
        return matmul_dtype
    try:
        kind = jax.devices()[0].device_kind.lower()
    except Exception:
        kind = ""
    if ("v6" in kind) or ("v7" in kind):
        return jnp.bfloat16
    return jnp.float32


def _make_proj_kernel(n_valid, tn, mask_row, mask_needed, matmul_dtype):
    """1x1x1-conv projections for one (batch, spatial-tile) block."""

    def kernel(x_ref, wq_ref, bq_ref, wk_ref, bk_ref, wv_ref, bv_ref,
               q_ref, k_ref, v_ref):
        f32 = jnp.float32
        x = x_ref[0].astype(matmul_dtype)                       # (C, tn)
        # bf16 MXU operands, f32 accumulation, f32 bias add.
        q = jnp.dot(wq_ref[...], x, preferred_element_type=f32) + bq_ref[...]
        k = jnp.dot(wk_ref[...], x, preferred_element_type=f32) + bk_ref[...]
        v = jnp.dot(wv_ref[...], x, preferred_element_type=f32) + bv_ref[...]
        if mask_needed:
            # Fold the key-padding mask into a spare padded channel row:
            #   q[mask_row, :] = 1 ; k[mask_row, j] = 0 (valid) / -1e30 (pad)
            # so the attention kernel's QK^T already contains -1e30 for padded
            # keys and needs no per-step masking.
            rows = lax.broadcasted_iota(jnp.int32, q.shape, 0)
            cols = (pl.program_id(1) * tn
                    + lax.broadcasted_iota(jnp.int32, q.shape, 1))
            q = jnp.where(rows == mask_row, 1.0, q)
            kmask = jnp.where(cols < n_valid, 0.0, _MASK_VAL)
            k = jnp.where(rows == mask_row, kmask, k)
        q_ref[0] = q.astype(q_ref.dtype)
        k_ref[0] = k.astype(k_ref.dtype)
        v_ref[0] = v.astype(v_ref.dtype)

    return kernel


def _make_attn_kernel(matmul_dtype, exp_dtype):
    """Flash-style PAM attention + gamma-residual for one query tile."""

    def kernel(xq_ref, q_ref, k_ref, v_ref, gamma_ref, o_ref,
               m_scr, l_scr, acc_scr):
        f32 = jnp.float32
        ki = pl.program_id(2)
        nk = pl.num_programs(2)

        # ---- init (once per (b, query-tile)): reset softmax stats
        @pl.when(ki == 0)
        def _():
            m_scr[...] = jnp.full_like(m_scr, -jnp.inf)
            l_scr[...] = jnp.zeros_like(l_scr)
            acc_scr[...] = jnp.zeros_like(acc_scr)

        q = q_ref[0]                                            # (Cqp, tq) bf16
        k = k_ref[0]                                            # (Cqp, tk) bf16
        v = v_ref[0]                                            # (C,   tk) bf16

        # energy tile: s[j, i] = sum_c k[c, j] * q[c, i]  ->  (tk, tq)
        # (keys on the sublane axis so all softmax stats are (1, tq) rows that
        #  broadcast cheaply against the (C, tq) accumulator)
        s = lax.dot_general(k, q, (((0,), (0,)), ((), ())),
                            preferred_element_type=f32)

        # ---- online softmax update (stats & accumulation in f32)
        m_prev = m_scr[...]                                     # (1, tq)
        m_new = jnp.maximum(m_prev, jnp.max(s, axis=0, keepdims=True))
        alpha = jnp.exp(m_prev - m_new)                         # (1, tq) f32
        p = jnp.exp((s - m_new).astype(exp_dtype))              # (tk, tq)
        l_scr[...] = alpha * l_scr[...] + jnp.sum(
            p.astype(f32), axis=0, keepdims=True)
        p_mm = p if p.dtype == matmul_dtype else p.astype(matmul_dtype)
        acc_scr[...] = alpha * acc_scr[...] + jnp.dot(
            v, p_mm, preferred_element_type=f32)                # (C, tq)
        m_scr[...] = m_new

        # ---- finalize: normalize, scale by gamma, residual add
        @pl.when(ki == nk - 1)
        def _():
            if matmul_dtype == jnp.float32:
                inv_l = 1.0 / l_scr[...]
            else:
                inv_l = pl.reciprocal(l_scr[...], approx=True)  # EUP slot
            out = acc_scr[...] * inv_l                          # (C, tq)
            gamma = gamma_ref[0]                                # SMEM scalar
            o_ref[0] = (gamma * out + xq_ref[0].astype(f32)).astype(o_ref.dtype)

    return kernel


def pam_forward(x, wq, bq, wk, bk, wv, bv, gamma, *,
                tq=512, tk=512, matmul_dtype=jnp.bfloat16, exp_dtype=None,
                vmem_limit_bytes=48 * 1024 * 1024):
    """PAM_Module.forward: x (B, C, D, H, W) -> (B, C, D, H, W)."""
    B, C, D, H, W = x.shape
    N = D * H * W
    Cq = wq.shape[0]
    assert tq % 128 == 0 and tk % 128 == 0

    if exp_dtype is None:
        exp_dtype = _default_exp_dtype(matmul_dtype)

    # Clamp tiles for small problems; pad spatial dim so every tile is
    # lane-aligned and divides n_pad.
    tq = min(tq, _round_up(N, 128))
    tk = min(tk, _round_up(N, 128))
    n_pad = _round_up(N, math.lcm(tq, tk))
    mask_needed = (n_pad != N)

    # Pad the tiny Q/K channel dim (C // 8) to >= 8 sublanes; reserve one extra
    # padded row as the key-padding "mask channel" (see _make_proj_kernel).
    cq_pad = _round_up(max(Cq + 1, 8), 8)
    mask_row = Cq

    f32 = jnp.float32
    x_flat = x.reshape(B, C, N)
    if mask_needed:
        x_flat = jnp.pad(x_flat, ((0, 0), (0, 0), (0, n_pad - N)))

    def pad_qk(w, b):
        w_p = jnp.zeros((cq_pad, C), matmul_dtype).at[:Cq, :].set(
            w.astype(matmul_dtype))
        b_p = jnp.zeros((cq_pad, 1), f32).at[:Cq, 0].set(b.astype(f32))
        return w_p, b_p

    wq_p, bq_p = pad_qk(wq, bq)
    wk_p, bk_p = pad_qk(wk, bk)
    wv_p = wv.astype(matmul_dtype)
    bv_p = bv.reshape(C, 1).astype(f32)
    gamma_p = gamma.reshape(1).astype(f32)

    # ---------------- Pass 1: projections (each x element touched once) ----
    tn = tq
    proj_kernel = _make_proj_kernel(N, tn, mask_row, mask_needed, matmul_dtype)
    q_all, k_all, v_all = pl.pallas_call(
        proj_kernel,
        out_shape=(
            jax.ShapeDtypeStruct((B, cq_pad, n_pad), matmul_dtype),
            jax.ShapeDtypeStruct((B, cq_pad, n_pad), matmul_dtype),
            jax.ShapeDtypeStruct((B, C, n_pad), matmul_dtype),
        ),
        grid_spec=pltpu.PrefetchScalarGridSpec(
            num_scalar_prefetch=0,
            grid=(B, n_pad // tn),
            in_specs=[
                pl.BlockSpec((1, C, tn), lambda b, ni: (b, 0, ni)),   # x tile
                pl.BlockSpec((cq_pad, C), lambda b, ni: (0, 0)),      # Wq (bf16)
                pl.BlockSpec((cq_pad, 1), lambda b, ni: (0, 0)),      # bq (f32)
                pl.BlockSpec((cq_pad, C), lambda b, ni: (0, 0)),      # Wk
                pl.BlockSpec((cq_pad, 1), lambda b, ni: (0, 0)),      # bk
                pl.BlockSpec((C, C), lambda b, ni: (0, 0)),           # Wv
                pl.BlockSpec((C, 1), lambda b, ni: (0, 0)),           # bv
            ],
            out_specs=[
                pl.BlockSpec((1, cq_pad, tn), lambda b, ni: (b, 0, ni)),
                pl.BlockSpec((1, cq_pad, tn), lambda b, ni: (b, 0, ni)),
                pl.BlockSpec((1, C, tn), lambda b, ni: (b, 0, ni)),
            ],
        ),
        compiler_params=pltpu.CompilerParams(
            dimension_semantics=("parallel", "parallel"),
            vmem_limit_bytes=vmem_limit_bytes,
        ),
    )(x_flat, wq_p, bq_p, wk_p, bk_p, wv_p, bv_p)

    # ---------------- Pass 2: flash attention + gamma * out + x ------------
    attn_kernel = _make_attn_kernel(matmul_dtype, exp_dtype)
    grid = (B, n_pad // tq, n_pad // tk)
    out_flat = pl.pallas_call(
        attn_kernel,
        out_shape=jax.ShapeDtypeStruct((B, C, n_pad), x.dtype),
        grid_spec=pltpu.PrefetchScalarGridSpec(
            num_scalar_prefetch=0,
            grid=grid,
            in_specs=[
                pl.BlockSpec((1, C, tq), lambda b, qi, ki: (b, 0, qi)),       # x (residual)
                pl.BlockSpec((1, cq_pad, tq), lambda b, qi, ki: (b, 0, qi)),  # q tile
                pl.BlockSpec((1, cq_pad, tk), lambda b, qi, ki: (b, 0, ki)),  # k tile
                pl.BlockSpec((1, C, tk), lambda b, qi, ki: (b, 0, ki)),       # v tile
                pl.BlockSpec(memory_space=pltpu.MemorySpace.SMEM),            # gamma
            ],
            out_specs=pl.BlockSpec((1, C, tq), lambda b, qi, ki: (b, 0, qi)),
            scratch_shapes=[
                pltpu.VMEM((1, tq), jnp.float32),     # running max
                pltpu.VMEM((1, tq), jnp.float32),     # running sum
                pltpu.VMEM((C, tq), jnp.float32),     # output accumulator
            ],
        ),
        compiler_params=pltpu.CompilerParams(
            dimension_semantics=("parallel", "parallel", "arbitrary"),
            vmem_limit_bytes=vmem_limit_bytes,
        ),
    )(x_flat, q_all, k_all, v_all, gamma_p)

    return out_flat[:, :, :N].reshape(B, C, D, H, W)


def pam_reference(x, wq, bq, wk, bk, wv, bv, gamma):
    """Pure-JAX reference of the (intended) PyTorch forward."""
    B, C, D, H, W = x.shape
    N = D * H * W
    xf = x.reshape(B, C, N)
    q = jnp.einsum('oc,bcn->bon', wq, xf) + bq[None, :, None]
    k = jnp.einsum('oc,bcn->bon', wk, xf) + bk[None, :, None]
    v = jnp.einsum('oc,bcn->bon', wv, xf) + bv[None, :, None]
    energy = jnp.einsum('bci,bcj->bij', q, k)
    attn = jax.nn.softmax(energy, axis=-1)
    out = jnp.einsum('bcj,bij->bci', v, attn).reshape(B, C, D, H, W)
    return gamma.reshape(()) * out + x


if __name__ == "__main__":
    key = jax.random.PRNGKey(0)
    B, C, D, H, W = 2, 16, 4, 8, 10      # in_dim=16 -> query/key channels = 2
    Cq = C // 8
    ks = jax.random.split(key, 7)

    x = jax.random.normal(ks[0], (B, C, D, H, W), dtype=jnp.float32)
    # Conv3d weights are (out, in, 1, 1, 1); kept as (out, in).
    wq = jax.random.normal(ks[1], (Cq, C), dtype=jnp.float32) * 0.1
    bq = jax.random.normal(ks[2], (Cq,), dtype=jnp.float32) * 0.1
    wk = jax.random.normal(ks[3], (Cq, C), dtype=jnp.float32) * 0.1
    bk = jax.random.normal(ks[4], (Cq,), dtype=jnp.float32) * 0.1
    wv = jax.random.normal(ks[5], (C, C), dtype=jnp.float32) * 0.1
    bv = jax.random.normal(ks[6], (C,), dtype=jnp.float32) * 0.1
    # Module __init__ sets gamma = 0 (output would trivially equal x);
    # use a nonzero value so the attention path is actually exercised.
    gamma = jnp.array([0.5], dtype=jnp.float32)

    ref = pam_reference(x, wq, bq, wk, bk, wv, bv, gamma)

    # Default path: bf16 q/k/v + bf16 MXU operands, f32 softmax stats/accum.
    # N=320 -> padded to 384: exercises the folded key-padding mask channel.
    out = jax.block_until_ready(pam_forward(x, wq, bq, wk, bk, wv, bv, gamma))
    assert out.shape == (B, C, D, H, W)
    assert jnp.allclose(out, ref, atol=2e-2, rtol=2e-2), \
        float(jnp.max(jnp.abs(out - ref)))

    # Small-tile bf16 path: 3x3 query/key tiling exercises the multi-kv-tile
    # online softmax together with the padded final key tile.
    out_tiled = jax.block_until_ready(
        pam_forward(x, wq, bq, wk, bk, wv, bv, gamma, tq=128, tk=128))
    assert jnp.allclose(out_tiled, ref, atol=2e-2, rtol=2e-2), \
        float(jnp.max(jnp.abs(out_tiled - ref)))

    # f32 validation path (exact divide, f32 exp, f32 MXU operands).
    out32 = jax.block_until_ready(
        pam_forward(x, wq, bq, wk, bk, wv, bv, gamma,
                    tq=128, tk=128, matmul_dtype=jnp.float32))
    assert jnp.allclose(out32, ref, atol=1e-4, rtol=1e-4), \
        float(jnp.max(jnp.abs(out32 - ref)))

    print("KERNEL_OK")
</pallas_src>

<mosaic_0001>
module attributes {stable_mosaic.version = 11 : i64} {
  func.func @kernel(%arg0: i32, %arg1: i32, %arg2: memref<1x16x384xf32, #tpu.memory_space<vmem>>, %arg3: memref<8x16xbf16, #tpu.memory_space<vmem>>, %arg4: memref<8x1xf32, #tpu.memory_space<vmem>>, %arg5: memref<8x16xbf16, #tpu.memory_space<vmem>>, %arg6: memref<8x1xf32, #tpu.memory_space<vmem>>, %arg7: memref<16x16xbf16, #tpu.memory_space<vmem>>, %arg8: memref<16x1xf32, #tpu.memory_space<vmem>>, %arg9: memref<1x8x384xbf16, #tpu.memory_space<vmem>>, %arg10: memref<1x8x384xbf16, #tpu.memory_space<vmem>>, %arg11: memref<1x16x384xbf16, #tpu.memory_space<vmem>>) attributes {dimension_semantics = [#tpu.dimension_semantics<parallel>, #tpu.dimension_semantics<parallel>], iteration_bounds = array<i64: 2, 1>, scalar_prefetch = 0 : i64, scratch_operands = 0 : i64, tpu.core_type = #tpu.core_type<tc>, window_params = [{transform_indices = @transform_0, window_bounds = array<i64: 1, 16, 384>}, {pipeline_mode = #tpu.pipeline_mode<synchronous>, transform_indices = @transform_1, window_bounds = array<i64: 8, 16>}, {pipeline_mode = #tpu.pipeline_mode<synchronous>, transform_indices = @transform_2, window_bounds = array<i64: 8, 1>}, {pipeline_mode = #tpu.pipeline_mode<synchronous>, transform_indices = @transform_3, window_bounds = array<i64: 8, 16>}, {pipeline_mode = #tpu.pipeline_mode<synchronous>, transform_indices = @transform_4, window_bounds = array<i64: 8, 1>}, {pipeline_mode = #tpu.pipeline_mode<synchronous>, transform_indices = @transform_5, window_bounds = array<i64: 16, 16>}, {pipeline_mode = #tpu.pipeline_mode<synchronous>, transform_indices = @transform_6, window_bounds = array<i64: 16, 1>}, {transform_indices = @transform_7, window_bounds = array<i64: 1, 8, 384>}, {transform_indices = @transform_8, window_bounds = array<i64: 1, 8, 384>}, {transform_indices = @transform_9, window_bounds = array<i64: 1, 16, 384>}]} {
    %c0 = arith.constant 0 : index
    %c0_0 = arith.constant 0 : index
    %c0_1 = arith.constant 0 : index
    %0 = vector.load %arg2[%c0, %c0_0, %c0_1] : memref<1x16x384xf32, #tpu.memory_space<vmem>>, vector<1x16x384xf32>
    %1 = vector.shape_cast %0 : vector<1x16x384xf32> to vector<16x384xf32>
    %2 = arith.truncf %1 : vector<16x384xf32> to vector<16x384xbf16>
    %c0_2 = arith.constant 0 : index
    %c0_3 = arith.constant 0 : index
    %3 = vector.load %arg3[%c0_2, %c0_3] : memref<8x16xbf16, #tpu.memory_space<vmem>>, vector<8x16xbf16>
    %cst = arith.constant dense<0.000000e+00> : vector<8x384xf32>
    %4 = tpu.matmul %3, %2, %cst {dimension_numbers = #tpu.dot_dimension_numbers<[1], [0], [0], [1], [0, 0, 1, 1], [], []>} : vector<8x16xbf16>, vector<16x384xbf16>, vector<8x384xf32> -> vector<8x384xf32>
    %c0_4 = arith.constant 0 : index
    %c0_5 = arith.constant 0 : index
    %5 = vector.load %arg4[%c0_4, %c0_5] : memref<8x1xf32, #tpu.memory_space<vmem>>, vector<8x1xf32>
    %6 = vector.broadcast %5 : vector<8x1xf32> to vector<8x384xf32>
    %7 = arith.addf %4, %6 : vector<8x384xf32>
    %c0_6 = arith.constant 0 : index
    %c0_7 = arith.constant 0 : index
    %8 = vector.load %arg5[%c0_6, %c0_7] : memref<8x16xbf16, #tpu.memory_space<vmem>>, vector<8x16xbf16>
    %cst_8 = arith.constant dense<0.000000e+00> : vector<8x384xf32>
    %9 = tpu.matmul %8, %2, %cst_8 {dimension_numbers = #tpu.dot_dimension_numbers<[1], [0], [0], [1], [0, 0, 1, 1], [], []>} : vector<8x16xbf16>, vector<16x384xbf16>, vector<8x384xf32> -> vector<8x384xf32>
    %c0_9 = arith.constant 0 : index
    %c0_10 = arith.constant 0 : index
    %10 = vector.load %arg6[%c0_9, %c0_10] : memref<8x1xf32, #tpu.memory_space<vmem>>, vector<8x1xf32>
    %11 = vector.broadcast %10 : vector<8x1xf32> to vector<8x384xf32>
    %12 = arith.addf %9, %11 : vector<8x384xf32>
    %c0_11 = arith.constant 0 : index
    %c0_12 = arith.constant 0 : index
    %13 = vector.load %arg7[%c0_11, %c0_12] : memref<16x16xbf16, #tpu.memory_space<vmem>>, vector<16x16xbf16>
    %cst_13 = arith.constant dense<0.000000e+00> : vector<16x384xf32>
    %14 = tpu.matmul %13, %2, %cst_13 {dimension_numbers = #tpu.dot_dimension_numbers<[1], [0], [0], [1], [0, 0, 1, 1], [], []>} : vector<16x16xbf16>, vector<16x384xbf16>, vector<16x384xf32> -> vector<16x384xf32>
    %c0_14 = arith.constant 0 : index
    %c0_15 = arith.constant 0 : index
    %15 = vector.load %arg8[%c0_14, %c0_15] : memref<16x1xf32, #tpu.memory_space<vmem>>, vector<16x1xf32>
    %16 = vector.broadcast %15 : vector<16x1xf32> to vector<16x384xf32>
    %17 = arith.addf %14, %16 : vector<16x384xf32>
    %18 = tpu.iota {dimensions = array<i32: 0>} : vector<8x384xi32>
    %c384_i32 = arith.constant 384 : i32
    %19 = arith.muli %arg1, %c384_i32 : i32
    %20 = tpu.iota {dimensions = array<i32: 1>} : vector<8x384xi32>
    %21 = vector.broadcast %19 : i32 to vector<8x384xi32>
    %22 = arith.addi %21, %20 : vector<8x384xi32>
    %c2_i32 = arith.constant 2 : i32
    %23 = vector.broadcast %c2_i32 : i32 to vector<8x384xi32>
    %24 = arith.cmpi eq, %18, %23 : vector<8x384xi32>
    %cst_16 = arith.constant 1.000000e+00 : f32
    %25 = vector.broadcast %cst_16 : f32 to vector<8x384xf32>
    %26 = arith.select %24, %25, %7 : vector<8x384xi1>, vector<8x384xf32>
    %c320_i32 = arith.constant 320 : i32
    %27 = vector.broadcast %c320_i32 : i32 to vector<8x384xi32>
    %28 = arith.cmpi slt, %22, %27 : vector<8x384xi32>
    %cst_17 = arith.constant 0.000000e+00 : f32
    %cst_18 = arith.constant -1.000000e+30 : f32
    %29 = vector.broadcast %cst_17 : f32 to vector<8x384xf32>
    %30 = vector.broadcast %cst_18 : f32 to vector<8x384xf32>
    %31 = arith.select %28, %29, %30 : vector<8x384xi1>, vector<8x384xf32>
    %c2_i32_19 = arith.constant 2 : i32
    %32 = vector.broadcast %c2_i32_19 : i32 to vector<8x384xi32>
    %33 = arith.cmpi eq, %18, %32 : vector<8x384xi32>
    %34 = arith.select %33, %31, %12 : vector<8x384xi1>, vector<8x384xf32>
    %35 = arith.truncf %26 : vector<8x384xf32> to vector<8x384xbf16>
    %c0_20 = arith.constant 0 : index
    %c0_21 = arith.constant 0 : index
    %c0_22 = arith.constant 0 : index
    %36 = vector.load %arg9[%c0_20, %c0_21, %c0_22] : memref<1x8x384xbf16, #tpu.memory_space<vmem>>, vector<1x8x384xbf16>
    %37 = vector.shape_cast %36 : vector<1x8x384xbf16> to vector<8x384xbf16>
    %38 = vector.shape_cast %35 : vector<8x384xbf16> to vector<1x8x384xbf16>
    tpu.vector_store %arg9[%c0_20, %c0_21, %c0_22], %38 {strides = array<i32>} : memref<1x8x384xbf16, #tpu.memory_space<vmem>>, vector<1x8x384xbf16>,
    %39 = arith.truncf %34 : vector<8x384xf32> to vector<8x384xbf16>
    %c0_23 = arith.constant 0 : index
    %c0_24 = arith.constant 0 : index
    %c0_25 = arith.constant 0 : index
    %40 = vector.load %arg10[%c0_23, %c0_24, %c0_25] : memref<1x8x384xbf16, #tpu.memory_space<vmem>>, vector<1x8x384xbf16>
    %41 = vector.shape_cast %40 : vector<1x8x384xbf16> to vector<8x384xbf16>
    %42 = vector.shape_cast %39 : vector<8x384xbf16> to vector<1x8x384xbf16>
    tpu.vector_store %arg10[%c0_23, %c0_24, %c0_25], %42 {strides = array<i32>} : memref<1x8x384xbf16, #tpu.memory_space<vmem>>, vector<1x8x384xbf16>,
    %43 = arith.truncf %17 : vector<16x384xf32> to vector<16x384xbf16>
    %c0_26 = arith.constant 0 : index
    %c0_27 = arith.constant 0 : index
    %c0_28 = arith.constant 0 : index
    %44 = vector.load %arg11[%c0_26, %c0_27, %c0_28] : memref<1x16x384xbf16, #tpu.memory_space<vmem>>, vector<1x16x384xbf16>
    %45 = vector.shape_cast %44 : vector<1x16x384xbf16> to vector<16x384xbf16>
    %46 = vector.shape_cast %43 : vector<16x384xbf16> to vector<1x16x384xbf16>
    tpu.vector_store %arg11[%c0_26, %c0_27, %c0_28], %46 {strides = array<i32>} : memref<1x16x384xbf16, #tpu.memory_space<vmem>>, vector<1x16x384xbf16>,
    return
  }
  func.func @transform_0(%arg0: i32, %arg1: i32) -> (i32, i32, i32) {
    %c0_i32 = arith.constant 0 : i32
    %c0_i32_0 = arith.constant 0 : i32
    return %arg0, %c0_i32, %arg1 : i32, i32, i32
  }
  func.func @transform_1(%arg0: i32, %arg1: i32) -> (i32, i32) {
    %c0_i32 = arith.constant 0 : i32
    %c0_i32_0 = arith.constant 0 : i32
    %c0_i32_1 = arith.constant 0 : i32
    return %c0_i32, %c0_i32_0 : i32, i32
  }
  func.func @transform_2(%arg0: i32, %arg1: i32) -> (i32, i32) {
    %c0_i32 = arith.constant 0 : i32
    %c0_i32_0 = arith.constant 0 : i32
    %c0_i32_1 = arith.constant 0 : i32
    return %c0_i32, %c0_i32_0 : i32, i32
  }
  func.func @transform_3(%arg0: i32, %arg1: i32) -> (i32, i32) {
    %c0_i32 = arith.constant 0 : i32
    %c0_i32_0 = arith.constant 0 : i32
    %c0_i32_1 = arith.constant 0 : i32
    return %c0_i32, %c0_i32_0 : i32, i32
  }
  func.func @transform_4(%arg0: i32, %arg1: i32) -> (i32, i32) {
    %c0_i32 = arith.constant 0 : i32
    %c0_i32_0 = arith.constant 0 : i32
    %c0_i32_1 = arith.constant 0 : i32
    return %c0_i32, %c0_i32_0 : i32, i32
  }
  func.func @transform_5(%arg0: i32, %arg1: i32) -> (i32, i32) {
    %c0_i32 = arith.constant 0 : i32
    %c0_i32_0 = arith.constant 0 : i32
    %c0_i32_1 = arith.constant 0 : i32
    return %c0_i32, %c0_i32_0 : i32, i32
  }
  func.func @transform_6(%arg0: i32, %arg1: i32) -> (i32, i32) {
    %c0_i32 = arith.constant 0 : i32
    %c0_i32_0 = arith.constant 0 : i32
    %c0_i32_1 = arith.constant 0 : i32
    return %c0_i32, %c0_i32_0 : i32, i32
  }
  func.func @transform_7(%arg0: i32, %arg1: i32) -> (i32, i32, i32) {
    %c0_i32 = arith.constant 0 : i32
    %c0_i32_0 = arith.constant 0 : i32
    return %arg0, %c0_i32, %arg1 : i32, i32, i32
  }
  func.func @transform_8(%arg0: i32, %arg1: i32) -> (i32, i32, i32) {
    %c0_i32 = arith.constant 0 : i32
    %c0_i32_0 = arith.constant 0 : i32
    return %arg0, %c0_i32, %arg1 : i32, i32, i32
  }
  func.func @transform_9(%arg0: i32, %arg1: i32) -> (i32, i32, i32) {
    %c0_i32 = arith.constant 0 : i32
    %c0_i32_0 = arith.constant 0 : i32
    return %arg0, %c0_i32, %arg1 : i32, i32, i32
  }
}

</mosaic_0001>

<llo_original>
// kernel: tpu_custom_call.1
$region0: #{tpu_custom_call.1}
  #allocation0 [shape = 'u32[]', space=smem, size = 0x4, offset = 0x4, fixed_abs, tag = 'smem constant byte address 0x4 - core index']
  #allocation1 [shape = 'u32[72,128]{1,0:T(1,128)}', space=vmem, size = 0x9000, scoped, tag = 'internal scratch']
  %s0 = inlined_call_operand.hbm [shape: f32[2,16,384], index: 0, kind: input, shape index: {}]
  %s1 = inlined_call_operand.vmem [shape: bf16[8,16], index: 1, kind: input, shape index: {}]
  %s2 = inlined_call_operand.vmem [shape: f32[8,1], index: 2, kind: input, shape index: {}]
  %s3 = inlined_call_operand.vmem [shape: bf16[8,16], index: 3, kind: input, shape index: {}]
  %s4 = inlined_call_operand.vmem [shape: f32[8,1], index: 4, kind: input, shape index: {}]
  %s5 = inlined_call_operand.vmem [shape: bf16[16,16], index: 5, kind: input, shape index: {}]
  %s6 = inlined_call_operand.vmem [shape: f32[16,1], index: 6, kind: input, shape index: {}]
  %s7 = inlined_call_operand.hbm [shape: bf16[2,8,384], index: 7, kind: output, shape index: {0}]
  %s8 = inlined_call_operand.hbm [shape: bf16[2,8,384], index: 8, kind: output, shape index: {1}]
  %s9 = inlined_call_operand.hbm [shape: bf16[2,16,384], index: 9, kind: output, shape index: {2}]
  %10 = xla_tuple %s7, %s8, %s9
  %s11 = sld [smem:[#allocation0]]
  $region81: #{tpu_custom_call.1} parent=0
    _
  %s13 = ssub.s32 1, %s11
  %s14 = scalar_select 0, %s13, %s11
  $region1: #{tpu_custom_call.1} parent=0
    #allocation2 [shape = 'u8[49152]{0}', space=vmem, size = 0xc000, scoped, tag = 'input window, operand 0']
    #allocation3 [shape = 's32[2]{0}', space=sflag, size = 0x8, scoped, tag = 'scoped memory for tpu_custom_call.1']
    #allocation4 [shape = 's32[2]{0}', space=sflag, size = 0x8, scoped, tag = 'scoped memory for tpu_custom_call.1']
    #allocation5 [shape = 'u8[12288]{0}', space=vmem, size = 0x3000, scoped, tag = 'output window, operand 0']
    #allocation6 [shape = 'u8[12288]{0}', space=vmem, size = 0x3000, scoped, tag = 'output window, operand 1']
    #allocation7 [shape = 's32[2]{0}', space=sflag, size = 0x8, scoped, tag = 'scoped memory for tpu_custom_call.1']
    #allocation8 [shape = 'u8[24576]{0}', space=vmem, size = 0x6000, scoped, tag = 'output window, operand 2']
    %15 = vsyncpa [#allocation3], 0
    %s16 = scalar_lea.sflag [#allocation3], 1
    %17 = vsyncpa %s16, 0
    %18 = vsyncpa [#allocation4], 0
    %s19 = scalar_lea.sflag [#allocation4], 1
    %20 = vsyncpa %s19, 0
    %21 = vsyncpa [#allocation7], 0
    %s22 = scalar_lea.sflag [#allocation7], 1
    %23 = vsyncpa %s22, 0
    loop: start=0, step=1, limit=4
    $region2: #{tpu_custom_call.1} parent=1 // loop_pre_header
      _
    $region3: #{tpu_custom_call.1} parent=1 // loop_header
      %s25 = sphi 0, %s29
      %p26 = scmp.ge.s32.totalorder %s25, 4
      %s32 = sphi 0, %s44
      %s33 = sphi 0, %s40
      %s34 = sphi 0, %s32
      %s35 = sphi 0, %s33
      %s36 = sphi 0, %s34
      %s37 = sphi 0, %s35
      %s49 = sphi 0, %s51
      %s52 = sphi 0, %s49
      %s53 = sphi 0, %s52
      %s69 = sphi 0, %s53
      %s73 = sphi 0, %s73
      %s75 = sphi 0, %s73
      %s76 = sphi 0, %s75
      %s90 = sphi 0, %s76
      %s94 = sphi 0, %s94
      %s96 = sphi 0, %s94
      %s97 = sphi 0, %s96
      %s111 = sphi 0, %s97
      %s115 = sphi 0, %s115
      %s117 = sphi 0, %s115
      %s118 = sphi 0, %s117
      %s132 = sphi 0, %s118
      %s136 = sphi 0, %s136
      %s138 = sphi 0, %s136
      %s139 = sphi 0, %s138
      %s153 = sphi 0, %s139
      %s157 = sphi 0, %s157
      %s159 = sphi 0, %s157
      %s160 = sphi 0, %s159
      %s174 = sphi 0, %s160
      %s178 = sphi 0, %s178
      %s180 = sphi 0, %s178
      %s181 = sphi 0, %s180
      %s195 = sphi 0, %s181
      %s203 = sphi 0, %s205
      %s206 = sphi 0, %s203
      %s207 = sphi 0, %s206
      %s223 = sphi 0, %s207
      %s231 = sphi 0, %s233
      %s234 = sphi 0, %s231
      %s235 = sphi 0, %s234
      %s251 = sphi 0, %s235
      %s259 = sphi 0, %s261
      %s262 = sphi 0, %s259
      %s263 = sphi 0, %s262
      %s279 = sphi 0, %s263
    $region4: #{tpu_custom_call.1} parent=1 // loop_header_branch
      %28 = sbr.rel (%p26) target = $region8
    $region5: #{tpu_custom_call.1} parent=1 // loop_body
      %s30 = ssub.s32 %s25, 1
      %s31 = ssub.s32 %s25, 2
      %s38 = sadd.s32 1, %s33
      %p39 = scmp.ge.s32.totalorder %s38, 1
      %s40 = scalar_select %p39, 0, %s38
      %s41 = sadd.s32 1, %s32
      %s42 = scalar_select %p39, %s41, %s32
      %p43 = scmp.ge.s32.totalorder %s42, 2
      %s44 = scalar_select %p43, 0, %s42
      %s45 = ssub.s32 %s32, %s44
      %s46 = ssub.s32 %s33, %s40
      %s47 = sor.u32 %s45, %s46
      %p48 = scmp.eq.s32.totalorder %s47, 0
      %s50 = sadd.s32 %s49, 1
      %s51 = scalar_select %p48, %s49, %s50
      %p54 = pneg %p48
      %p55 = scmp.eq.s32.totalorder %s25, 1
      %p56 = por %p54, %p55
      %p57 = scmp.ne.s32.totalorder %s49, %s52
      %p58 = scmp.eq.s32.totalorder %s25, 0
      %p59 = por %p57, %p58
      %p60 = scmp.ne.s32.totalorder %s49, %s52
      %p61 = scmp.eq.s32.totalorder %s30, 1
      %p62 = por %p60, %p61
      %p63 = scmp.ne.s32.totalorder %s52, %s53
      %p64 = scmp.eq.s32.totalorder %s30, 0
      %p65 = por %p63, %p64
      %p66 = scmp.ne.s32.totalorder %s52, %s53
      %p67 = scmp.eq.s32.totalorder %s31, 1
      %p68 = por %p66, %p67
      %p70 = scmp.ne.s32.totalorder %s53, %s69
      %p71 = scmp.eq.s32.totalorder %s31, 0
      %p72 = por %p70, %p71
      %s74 = sadd.s32 %s73, 1
      %p77 = scmp.eq.s32.totalorder %s25, 1
      %p78 = scmp.ne.s32.totalorder %s73, %s75
      %p79 = scmp.eq.s32.totalorder %s25, 0
      %p80 = por %p78, %p79
      %p81 = scmp.ne.s32.totalorder %s73, %s75
      %p82 = scmp.eq.s32.totalorder %s30, 1
      %p83 = por %p81, %p82
      %p84 = scmp.ne.s32.totalorder %s75, %s76
      %p85 = scmp.eq.s32.totalorder %s30, 0
      %p86 = por %p84, %p85
      %p87 = scmp.ne.s32.totalorder %s75, %s76
      %p88 = scmp.eq.s32.totalorder %s31, 1
      %p89 = por %p87, %p88
      %p91 = scmp.ne.s32.totalorder %s76, %s90
      %p92 = scmp.eq.s32.totalorder %s31, 0
      %p93 = por %p91, %p92
      %s95 = sadd.s32 %s94, 1
      %p98 = scmp.eq.s32.totalorder %s25, 1
      %p99 = scmp.ne.s32.totalorder %s94, %s96
      %p100 = scmp.eq.s32.totalorder %s25, 0
      %p101 = por %p99, %p100
      %p102 = scmp.ne.s32.totalorder %s94, %s96
      %p103 = scmp.eq.s32.totalorder %s30, 1
      %p104 = por %p102, %p103
      %p105 = scmp.ne.s32.totalorder %s96, %s97
      %p106 = scmp.eq.s32.totalorder %s30, 0
      %p107 = por %p105, %p106
      %p108 = scmp.ne.s32.totalorder %s96, %s97
      %p109 = scmp.eq.s32.totalorder %s31, 1
      %p110 = por %p108, %p109
      %p112 = scmp.ne.s32.totalorder %s97, %s111
      %p113 = scmp.eq.s32.totalorder %s31, 0
      %p114 = por %p112, %p113
      %s116 = sadd.s32 %s115, 1
      %p119 = scmp.eq.s32.totalorder %s25, 1
      %p120 = scmp.ne.s32.totalorder %s115, %s117
      %p121 = scmp.eq.s32.totalorder %s25, 0
      %p122 = por %p120, %p121
      %p123 = scmp.ne.s32.totalorder %s115, %s117
      %p124 = scmp.eq.s32.totalorder %s30, 1
      %p125 = por %p123, %p124
      %p126 = scmp.ne.s32.totalorder %s117, %s118
      %p127 = scmp.eq.s32.totalorder %s30, 0
      %p128 = por %p126, %p127
      %p129 = scmp.ne.s32.totalorder %s117, %s118
      %p130 = scmp.eq.s32.totalorder %s31, 1
      %p131 = por %p129, %p130
      %p133 = scmp.ne.s32.totalorder %s118, %s132
      %p134 = scmp.eq.s32.totalorder %s31, 0
      %p135 = por %p133, %p134
      %s137 = sadd.s32 %s136, 1
      %p140 = scmp.eq.s32.totalorder %s25, 1
      %p141 = scmp.ne.s32.totalorder %s136, %s138
      %p142 = scmp.eq.s32.totalorder %s25, 0
      %p143 = por %p141, %p142
      %p144 = scmp.ne.s32.totalorder %s136, %s138
      %p145 = scmp.eq.s32.totalorder %s30, 1
      %p146 = por %p144, %p145
      %p147 = scmp.ne.s32.totalorder %s138, %s139
      %p148 = scmp.eq.s32.totalorder %s30, 0
      %p149 = por %p147, %p148
      %p150 = scmp.ne.s32.totalorder %s138, %s139
      %p151 = scmp.eq.s32.totalorder %s31, 1
      %p152 = por %p150, %p151
      %p154 = scmp.ne.s32.totalorder %s139, %s153
      %p155 = scmp.eq.s32.totalorder %s31, 0
      %p156 = por %p154, %p155
      %s158 = sadd.s32 %s157, 1
      %p161 = scmp.eq.s32.totalorder %s25, 1
      %p162 = scmp.ne.s32.totalorder %s157, %s159
      %p163 = scmp.eq.s32.totalorder %s25, 0
      %p164 = por %p162, %p163
      %p165 = scmp.ne.s32.totalorder %s157, %s159
      %p166 = scmp.eq.s32.totalorder %s30, 1
      %p167 = por %p165, %p166
      %p168 = scmp.ne.s32.totalorder %s159, %s160
      %p169 = scmp.eq.s32.totalorder %s30, 0
      %p170 = por %p168, %p169
      %p171 = scmp.ne.s32.totalorder %s159, %s160
      %p172 = scmp.eq.s32.totalorder %s31, 1
      %p173 = por %p171, %p172
      %p175 = scmp.ne.s32.totalorder %s160, %s174
      %p176 = scmp.eq.s32.totalorder %s31, 0
      %p177 = por %p175, %p176
      %s179 = sadd.s32 %s178, 1
      %p182 = scmp.eq.s32.totalorder %s25, 1
      %p183 = scmp.ne.s32.totalorder %s178, %s180
      %p184 = scmp.eq.s32.totalorder %s25, 0
      %p185 = por %p183, %p184
      %p186 = scmp.ne.s32.totalorder %s178, %s180
      %p187 = scmp.eq.s32.totalorder %s30, 1
      %p188 = por %p186, %p187
      %p189 = scmp.ne.s32.totalorder %s180, %s181
      %p190 = scmp.eq.s32.totalorder %s30, 0
      %p191 = por %p189, %p190
      %p192 = scmp.ne.s32.totalorder %s180, %s181
      %p193 = scmp.eq.s32.totalorder %s31, 1
      %p194 = por %p192, %p193
      %p196 = scmp.ne.s32.totalorder %s181, %s195
      %p197 = scmp.eq.s32.totalorder %s31, 0
      %p198 = por %p196, %p197
      %s199 = ssub.s32 %s32, %s44
      %s200 = ssub.s32 %s33, %s40
      %s201 = sor.u32 %s199, %s200
      %p202 = scmp.eq.s32.totalorder %s201, 0
      %s204 = sadd.s32 %s203, 1
      %s205 = scalar_select %p202, %s203, %s204
      %p208 = pneg %p202
      %p209 = scmp.eq.s32.totalorder %s25, 1
      %p210 = por %p208, %p209
      %p211 = scmp.ne.s32.totalorder %s203, %s206
      %p212 = scmp.eq.s32.totalorder %s25, 0
      %p213 = por %p211, %p212
      %p214 = scmp.ne.s32.totalorder %s203, %s206
      %p215 = scmp.eq.s32.totalorder %s30, 1
      %p216 = por %p214, %p215
      %p217 = scmp.ne.s32.totalorder %s206, %s207
      %p218 = scmp.eq.s32.totalorder %s30, 0
      %p219 = por %p217, %p218
      %p220 = scmp.ne.s32.totalorder %s206, %s207
      %p221 = scmp.eq.s32.totalorder %s31, 1
      %p222 = por %p220, %p221
      %p224 = scmp.ne.s32.totalorder %s207, %s223
      %p225 = scmp.eq.s32.totalorder %s31, 0
      %p226 = por %p224, %p225
      %s227 = ssub.s32 %s32, %s44
      %s228 = ssub.s32 %s33, %s40
      %s229 = sor.u32 %s227, %s228
      %p230 = scmp.eq.s32.totalorder %s229, 0
      %s232 = sadd.s32 %s231, 1
      %s233 = scalar_select %p230, %s231, %s232
      %p236 = pneg %p230
      %p237 = scmp.eq.s32.totalorder %s25, 1
      %p238 = por %p236, %p237
      %p239 = scmp.ne.s32.totalorder %s231, %s234
      %p240 = scmp.eq.s32.totalorder %s25, 0
      %p241 = por %p239, %p240
      %p242 = scmp.ne.s32.totalorder %s231, %s234
      %p243 = scmp.eq.s32.totalorder %s30, 1
      %p244 = por %p242, %p243
      %p245 = scmp.ne.s32.totalorder %s234, %s235
      %p246 = scmp.eq.s32.totalorder %s30, 0
      %p247 = por %p245, %p246
      %p248 = scmp.ne.s32.totalorder %s234, %s235
      %p249 = scmp.eq.s32.totalorder %s31, 1
      %p250 = por %p248, %p249
      %p252 = scmp.ne.s32.totalorder %s235, %s251
      %p253 = scmp.eq.s32.totalorder %s31, 0
      %p254 = por %p252, %p253
      %s255 = ssub.s32 %s32, %s44
      %s256 = ssub.s32 %s33, %s40
      %s257 = sor.u32 %s255, %s256
      %p258 = scmp.eq.s32.totalorder %s257, 0
      %s260 = sadd.s32 %s259, 1
      %s261 = scalar_select %p258, %s259, %s260
      %p264 = pneg %p258
      %p265 = scmp.eq.s32.totalorder %s25, 1
      %p266 = por %p264, %p265
      %p267 = scmp.ne.s32.totalorder %s259, %s262
      %p268 = scmp.eq.s32.totalorder %s25, 0
      %p269 = por %p267, %p268
      %p270 = scmp.ne.s32.totalorder %s259, %s262
      %p271 = scmp.eq.s32.totalorder %s30, 1
      %p272 = por %p270, %p271
      %p273 = scmp.ne.s32.totalorder %s262, %s263
      %p274 = scmp.eq.s32.totalorder %s30, 0
      %p275 = por %p273, %p274
      %p276 = scmp.ne.s32.totalorder %s262, %s263
      %p277 = scmp.eq.s32.totalorder %s31, 1
      %p278 = por %p276, %p277
      %p280 = scmp.ne.s32.totalorder %s263, %s279
      %p281 = scmp.eq.s32.totalorder %s31, 0
      %p282 = por %p280, %p281
      %p283 = scmp.le.s32.totalorder 1, %s25
      %p284 = scmp.lt.s32.totalorder %s25, 3
      %p285 = pnand %p283, %p284
      %p286 = pneg %p285
      // Predicated region
      $region9: #{tpu_custom_call.1} parent=5 // pred_check
        _
      $region10: #{tpu_custom_call.1} parent=5 // pred_check_branch
        %288 = sbr.rel (%p285) target = $region12
      $region11: #{tpu_custom_call.1} parent=5 // pred_region
        %s289 = ssub.s32 %s25, 1
        // Predicated region
        $region13: #{tpu_custom_call.1} parent=11 // pred_check
          %p290 = pneg %p86
        $region14: #{tpu_custom_call.1} parent=11 // pred_check_branch
          %292 = sbr.rel (%p290) target = $region16
        $region15: #{tpu_custom_call.1} parent=11 // pred_region
          _
        $region16: #{tpu_custom_call.1} parent=11 // pred_fallthru
          _
        // Predicated region
        $region17: #{tpu_custom_call.1} parent=11 // pred_check
          %p293 = pneg %p107
        $region18: #{tpu_custom_call.1} parent=11 // pred_check_branch
          %295 = sbr.rel (%p293) target = $region20
        $region19: #{tpu_custom_call.1} parent=11 // pred_region
          _
        $region20: #{tpu_custom_call.1} parent=11 // pred_fallthru
          _
        // Predicated region
        $region21: #{tpu_custom_call.1} parent=11 // pred_check
          %p296 = pneg %p128
        $region22: #{tpu_custom_call.1} parent=11 // pred_check_branch
          %298 = sbr.rel (%p296) target = $region24
        $region23: #{tpu_custom_call.1} parent=11 // pred_region
          _
        $region24: #{tpu_custom_call.1} parent=11 // pred_fallthru
          _
        // Predicated region
        $region25: #{tpu_custom_call.1} parent=11 // pred_check
          %p299 = pneg %p149
        $region26: #{tpu_custom_call.1} parent=11 // pred_check_branch
          %301 = sbr.rel (%p299) target = $region28
        $region27: #{tpu_custom_call.1} parent=11 // pred_region
          _
        $region28: #{tpu_custom_call.1} parent=11 // pred_fallthru
          _
        // Predicated region
        $region29: #{tpu_custom_call.1} parent=11 // pred_check
          %p302 = pneg %p170
        $region30: #{tpu_custom_call.1} parent=11 // pred_check_branch
          %304 = sbr.rel (%p302) target = $region32
        $region31: #{tpu_custom_call.1} parent=11 // pred_region
          _
        $region32: #{tpu_custom_call.1} parent=11 // pred_fallthru
          _
        // Predicated region
        $region33: #{tpu_custom_call.1} parent=11 // pred_check
          %p305 = pneg %p191
        $region34: #{tpu_custom_call.1} parent=11 // pred_check_branch
          %307 = sbr.rel (%p305) target = $region36
        $region35: #{tpu_custom_call.1} parent=11 // pred_region
          _
        $region36: #{tpu_custom_call.1} parent=11 // pred_fallthru
          _
      $region12: #{tpu_custom_call.1} parent=5 // pred_fallthru
        _
      %p308 = scmp.lt.s32.totalorder %s25, 2
      // Predicated region
      $region37: #{tpu_custom_call.1} parent=5 // pred_check
        %p309 = pneg %p308
      $region38: #{tpu_custom_call.1} parent=5 // pred_check_branch
        %311 = sbr.rel (%p309) target = $region40
      $region39: #{tpu_custom_call.1} parent=5 // pred_region
        // Predicated region
        $region41: #{tpu_custom_call.1} parent=39 // pred_check
          %p312 = pneg %p59
        $region42: #{tpu_custom_call.1} parent=39 // pred_check_branch
          %314 = sbr.rel (%p312) target = $region44
        $region43: #{tpu_custom_call.1} parent=39 // pred_region
          %s315 = sand.u32 %s49, 1
          %s316 = scalar_lea.sflag [#allocation3], %s315
          %s317 = sand.u32 %s49, 1
          %s318 = smul.addr %s317, 48
          %s319 = scalar_lea.vmem [#allocation2], %s318
          %s320 = smul.u32 3, %s33
          %322 = vsyncadd %s316, 0
          %s323 = smul.addr %s32, 6
          %s324 = sadd.s32 %s320, %s323
          %s325 = smul.addr %s324, 8
          %s326 = scalar_lea.hbm %s0, %s325
          %s327 = sshll.u32 %s326, 4
          %s328 = int_to_ptr.hbm [resolvable:$true] %s327
          %s329 = sshll.u32 %s319, 4
          %s330 = int_to_ptr.vmem [resolvable:$true] %s329
          %335 = dma.hbm_to_vmem [thread:$0]  %s328, 768, %s330, %s316, 384, 384, 24
        $region44: #{tpu_custom_call.1} parent=39 // pred_fallthru
          _
      $region40: #{tpu_custom_call.1} parent=5 // pred_fallthru
        _
      %p336 = scmp.le.s32.totalorder 1, %s25
      %p337 = scmp.lt.s32.totalorder %s25, 3
      %p338 = pnand %p336, %p337
      %p339 = pneg %p338
      // Predicated region
      $region45: #{tpu_custom_call.1} parent=5 // pred_check
        _
      $region46: #{tpu_custom_call.1} parent=5 // pred_check_branch
        %341 = sbr.rel (%p338) target = $region48
      $region47: #{tpu_custom_call.1} parent=5 // pred_region
        %s342 = ssub.s32 %s25, 1
        %s343 = sand.u32 %s52, 1
        %s344 = scalar_lea.sflag [#allocation3], %s343
        %s345 = sand.u32 %s52, 1
        %s346 = smul.addr %s345, 48
        %s347 = scalar_lea.vmem [#allocation2], %s346
        // Predicated region
        $region49: #{tpu_custom_call.1} parent=47 // pred_check
          %p348 = pneg %p65
        $region50: #{tpu_custom_call.1} parent=47 // pred_check_branch
          %350 = sbr.rel (%p348) target = $region52
        $region51: #{tpu_custom_call.1} parent=47 // pred_region
          %352 = dma.done %s344, 768
        $region52: #{tpu_custom_call.1} parent=47 // pred_fallthru
          _
        %s353 = sand.u32 %s52, 1
        %s354 = scalar_lea.sflag [#allocation3], %s353
        %s355 = sand.u32 %s52, 1
        %s356 = smul.addr %s355, 48
        %s357 = scalar_lea.vmem [#allocation2], %s356
        %p358 = pneg %p65
        %p359 = pneg %p62
        %p360 = pneg %p86
        %p361 = pneg %p83
        %p362 = pneg %p107
        %p363 = pneg %p104
        %p364 = pneg %p128
        %p365 = pneg %p125
        %p366 = pneg %p149
        %p367 = pneg %p146
        %p368 = pneg %p170
        %p369 = pneg %p167
        %p370 = pneg %p191
        %p371 = pneg %p188
        %p372 = pneg %p219
        %p373 = pneg %p216
        %s374 = sand.u32 %s206, 1
        %s375 = scalar_lea.sflag [#allocation4], %s374
        %s376 = sand.u32 %s206, 1
        %s377 = smul.addr %s376, 12
        %s378 = scalar_lea.vmem [#allocation5], %s377
        %p379 = pneg %p247
        %p380 = pneg %p244
        %s381 = sand.u32 %s30, 1
        %s382 = scalar_lea.sflag [#allocation7], %s381
        %s383 = sand.u32 %s234, 1
        %s384 = smul.addr %s383, 12
        %s385 = scalar_lea.vmem [#allocation6], %s384
        %p386 = pneg %p275
        %p387 = pneg %p272
        %s388 = sand.u32 %s30, 1
        %s389 = scalar_lea.sflag [#allocation7], %s388
        %s390 = sand.u32 %s262, 1
        %s391 = smul.addr %s390, 24
        %s392 = scalar_lea.vmem [#allocation8], %s391
        %s393 = smul.u32 3, %s35
        %s394 = smul.u32 3, %s35
        %s395 = smul.u32 3, %s35
        %s396 = smul.u32 3, %s35
        %v398 = vld [vmem:[%s347] sm:$0xff]
        %v399 = vld [vmem:[%s347 + $0x8] sm:$0xff]
        %v400 = vld [vmem:[%s347 + $0x10] sm:$0xff]
        %v401 = vld [vmem:[%s347 + $0x18] sm:$0xff]
        %v402 = vld [vmem:[%s347 + $0x20] sm:$0xff]
        %v403 = vld [vmem:[%s347 + $0x28] sm:$0xff]
        %v404 = vpack.c.bf16 %v401, %v398
        %v405 = vpack.c.bf16 %v402, %v399
        %v406 = vpack.c.bf16 %v403, %v400
        %v407 = vld [vmem:[%s1] sm:$0xf]
        %v408 = vld [vmem:[%s2] sm:$0xff]
        %410 = vset.pattern.permute.xlu0 0
        %411 = vperm.xlu0 %410, %v408
        %v412 = vpop.permute.xlu0 %411
        %vm414 = vcmask 130048
        %v416 = vsel %vm414, %v407, 0
        %418 = vmatpush.bf16.msra.mxu0 0
        %419 = vmatpush.bf16.msra.mxu0 0
        %420 = vmatpush.bf16.msra.mxu0 0
        %421 = vmatpush.bf16.msra.mxu0 0
        %422 = vmatpush.bf16.msra.mxu0 0
        %423 = vmatpush.bf16.msra.mxu0 0
        %424 = vmatpush.bf16.msra.mxu0 0
        %425 = vmatpush.bf16.msra.mxu0 %v404
        %426 = vmatmul.bf16.gmra.mxu0 %v416
        %v427 = vpop.f32.mrf.mxu0
        %v428 = vadd.f32 %v412, %v427
        %v429 = vpop.f32.mrf.mxu0
        %430 = vdwg.mxu0
        %431 = vmatpush.bf16.msra.mxu0 0
        %432 = vmatpush.bf16.msra.mxu0 0
        %433 = vmatpush.bf16.msra.mxu0 0
        %434 = vmatpush.bf16.msra.mxu0 0
        %435 = vmatpush.bf16.msra.mxu0 0
        %436 = vmatpush.bf16.msra.mxu0 0
        %437 = vmatpush.bf16.msra.mxu0 0
        %438 = vmatpush.bf16.msra.mxu0 %v405
        %439 = vmatmul.bf16.gmra.mxu0 %v416
        %v440 = vpop.f32.mrf.mxu0
        %v441 = vadd.f32 %v412, %v440
        %v442 = vpop.f32.mrf.mxu0
        %443 = vdwg.mxu0
        %444 = vmatpush.bf16.msra.mxu0 0
        %445 = vmatpush.bf16.msra.mxu0 0
        %446 = vmatpush.bf16.msra.mxu0 0
        %447 = vmatpush.bf16.msra.mxu0 0
        %448 = vmatpush.bf16.msra.mxu0 0
        %449 = vmatpush.bf16.msra.mxu0 0
        %450 = vmatpush.bf16.msra.mxu0 0
        %451 = vmatpush.bf16.msra.mxu0 %v406
        %452 = vmatmul.bf16.gmra.mxu0 %v416
        %v453 = vpop.f32.mrf.mxu0
        %v454 = vadd.f32 %v412, %v453
        %v455 = vpop.f32.mrf.mxu0
        %456 = vdwg.mxu0
        %v457 = vld [vmem:[%s3] sm:$0xf]
        %v458 = vld [vmem:[%s4] sm:$0xff]
        %460 = vset.pattern.permute.xlu0 0
        %461 = vperm.xlu0 %460, %v458
        %v462 = vpop.permute.xlu0 %461
        %v465 = vsel %vm414, %v457, 0
        %467 = vmatpush.bf16.msra.mxu0 0
        %468 = vmatpush.bf16.msra.mxu0 0
        %469 = vmatpush.bf16.msra.mxu0 0
        %470 = vmatpush.bf16.msra.mxu0 0
        %471 = vmatpush.bf16.msra.mxu0 0
        %472 = vmatpush.bf16.msra.mxu0 0
        %473 = vmatpush.bf16.msra.mxu0 0
        %474 = vmatpush.bf16.msra.mxu0 %v404
        %475 = vmatmul.bf16.gmra.mxu0 %v465
        %v476 = vpop.f32.mrf.mxu0
        %v477 = vadd.f32 %v462, %v476
        %v478 = vpop.f32.mrf.mxu0
        %479 = vdwg.mxu0
        %480 = vmatpush.bf16.msra.mxu0 0
        %481 = vmatpush.bf16.msra.mxu0 0
        %482 = vmatpush.bf16.msra.mxu0 0
        %483 = vmatpush.bf16.msra.mxu0 0
        %484 = vmatpush.bf16.msra.mxu0 0
        %485 = vmatpush.bf16.msra.mxu0 0
        %486 = vmatpush.bf16.msra.mxu0 0
        %487 = vmatpush.bf16.msra.mxu0 %v405
        %488 = vmatmul.bf16.gmra.mxu0 %v465
        %v489 = vpop.f32.mrf.mxu0
        %v490 = vadd.f32 %v462, %v489
        %v491 = vpop.f32.mrf.mxu0
        %492 = vdwg.mxu0
        %493 = vmatpush.bf16.msra.mxu0 0
        %494 = vmatpush.bf16.msra.mxu0 0
        %495 = vmatpush.bf16.msra.mxu0 0
        %496 = vmatpush.bf16.msra.mxu0 0
        %497 = vmatpush.bf16.msra.mxu0 0
        %498 = vmatpush.bf16.msra.mxu0 0
        %499 = vmatpush.bf16.msra.mxu0 0
        %500 = vmatpush.bf16.msra.mxu0 %v406
        %501 = vmatmul.bf16.gmra.mxu0 %v465
        %v502 = vpop.f32.mrf.mxu0
        %v503 = vadd.f32 %v462, %v502
        %v504 = vpop.f32.mrf.mxu0
        %505 = vdwg.mxu0
        %v506 = vld [vmem:[%s5] sm:$0xf]
        %v507 = vld [vmem:[%s5 + $0x4] sm:$0xf]
        %v508 = vld [vmem:[%s6] sm:$0xff]
        %v509 = vld [vmem:[%s6 + $0x8] sm:$0xff]
        %511 = vset.pattern.permute.xlu0 0
        %512 = vperm.xlu0 %511, %v508
        %v513 = vpop.permute.xlu0 %512
        %516 = vset.pattern.permute.xlu0 0
        %517 = vperm.xlu0 %516, %v509
        %v518 = vpop.permute.xlu0 %517
        %v522 = vunpack.c.l.b16 %v506
        %v523 = vunpack.c.l.b16 %v507
        %v524 = vpack.c.b16 %v523, %v522
        %v526 = vsel %vm414, %v524, 0
        %528 = vmatpush.bf16.msra.mxu0 0
        %529 = vmatpush.bf16.msra.mxu0 0
        %530 = vmatpush.bf16.msra.mxu0 0
        %531 = vmatpush.bf16.msra.mxu0 0
        %532 = vmatpush.bf16.msra.mxu0 0
        %533 = vmatpush.bf16.msra.mxu0 0
        %534 = vmatpush.bf16.msra.mxu0 0
        %535 = vmatpush.bf16.msra.mxu0 %v404
        %536 = vmatmul.bf16.gmra.mxu0 %v526
        %v537 = vpop.f32.mrf.mxu0
        %v538 = vadd.f32 %v513, %v537
        %v539 = vpop.f32.mrf.mxu0
        %v540 = vadd.f32 %v518, %v539
        %541 = vdwg.mxu0
        %542 = vmatpush.bf16.msra.mxu0 0
        %543 = vmatpush.bf16.msra.mxu0 0
        %544 = vmatpush.bf16.msra.mxu0 0
        %545 = vmatpush.bf16.msra.mxu0 0
        %546 = vmatpush.bf16.msra.mxu0 0
        %547 = vmatpush.bf16.msra.mxu0 0
        %548 = vmatpush.bf16.msra.mxu0 0
        %549 = vmatpush.bf16.msra.mxu0 %v405
        %550 = vmatmul.bf16.gmra.mxu0 %v526
        %v551 = vpop.f32.mrf.mxu0
        %v552 = vadd.f32 %v513, %v551
        %v553 = vpop.f32.mrf.mxu0
        %v554 = vadd.f32 %v518, %v553
        %555 = vdwg.mxu0
        %556 = vmatpush.bf16.msra.mxu0 0
        %557 = vmatpush.bf16.msra.mxu0 0
        %558 = vmatpush.bf16.msra.mxu0 0
        %559 = vmatpush.bf16.msra.mxu0 0
        %560 = vmatpush.bf16.msra.mxu0 0
        %561 = vmatpush.bf16.msra.mxu0 0
        %562 = vmatpush.bf16.msra.mxu0 0
        %563 = vmatpush.bf16.msra.mxu0 %v406
        %564 = vmatmul.bf16.gmra.mxu0 %v526
        %v565 = vpop.f32.mrf.mxu0
        %v566 = vadd.f32 %v513, %v565
        %v567 = vpop.f32.mrf.mxu0
        %v568 = vadd.f32 %v518, %v567
        %569 = vdwg.mxu0
        %v570 = vlaneseq
        %v571 = vshrl.u32 %v570, 7
        %s572 = smul.u32 %s35, 384
        %v573 = vlaneseq
        %v574 = vand.u32 %v573, 127
        %v575 = vadd.s32 %v574, 128
        %v576 = vadd.s32 %v574, 256
        %v577 = vstv %s572
        %v578 = vadd.s32 %v577, %v574
        %v579 = vadd.s32 %v577, %v575
        %v580 = vadd.s32 %v577, %v576
        %vm581 = vcmp.eq.s32.totalorder %v571, 2
        %v582 = vsel %vm581, 1.0, %v428
        %v583 = vsel %vm581, 1.0, %v441
        %v584 = vsel %vm581, 1.0, %v454
        %vm585 = vcmp.lt.s32.totalorder %v578, 320
        %vm586 = vcmp.lt.s32.totalorder %v579, 320
        %vm587 = vcmp.lt.s32.totalorder %v580, 320
        %v588 = vsel %vm585, 0.0, -1e+30
        %v589 = vsel %vm586, 0.0, -1e+30
        %v590 = vsel %vm587, 0.0, -1e+30
        %v591 = vsel %vm581, %v588, %v477
        %v592 = vsel %vm581, %v589, %v490
        %v593 = vsel %vm581, %v590, %v503
        %v594 = vpack.c.bf16 %v583, %v582
        %v595 = vpack.c.bf16 %v584, %v584
        %596 = vst [vmem:[%s378] sm:$0xff] %v594
        %597 = vst [vmem:[%s378 + $0x8] sm:$0xf] %v595
        %v598 = vpack.c.bf16 %v592, %v591
        %v599 = vpack.c.bf16 %v593, %v593
        %600 = vst [vmem:[%s385] sm:$0xff] %v598
        %601 = vst [vmem:[%s385 + $0x8] sm:$0xf] %v599
        %v602 = vpack.c.bf16 %v552, %v538
        %v603 = vpack.c.bf16 %v566, %v566
        %v604 = vpack.c.bf16 %v554, %v540
        %v605 = vpack.c.bf16 %v568, %v568
        %606 = vst [vmem:[%s392] sm:$0xff] %v602
        %607 = vst [vmem:[%s392 + $0x8] sm:$0xf] %v603
        %608 = vst [vmem:[%s392 + $0xc] sm:$0xff] %v604
        %609 = vst [vmem:[%s392 + $0x14] sm:$0xf] %v605
        %s610 = sand.u32 %s206, 1
        %s611 = scalar_lea.sflag [#allocation4], %s610
        %s612 = sand.u32 %s206, 1
        %s613 = smul.addr %s612, 12
        %s614 = scalar_lea.vmem [#allocation5], %s613
        %s615 = sand.u32 %s30, 1
        %s616 = scalar_lea.sflag [#allocation7], %s615
        %s617 = sand.u32 %s234, 1
        %s618 = smul.addr %s617, 12
        %s619 = scalar_lea.vmem [#allocation6], %s618
        %s620 = sand.u32 %s30, 1
        %s621 = scalar_lea.sflag [#allocation7], %s620
        %s622 = sand.u32 %s262, 1
        %s623 = smul.addr %s622, 24
        %s624 = scalar_lea.vmem [#allocation8], %s623
        // Predicated region
        $region53: #{tpu_custom_call.1} parent=47 // pred_check
          %p625 = pneg %p216
        $region54: #{tpu_custom_call.1} parent=47 // pred_check_branch
          %627 = sbr.rel (%p625) target = $region56
        $region55: #{tpu_custom_call.1} parent=47 // pred_region
          %s628 = smul.u32 3, %s35
          %630 = vsyncadd %s611, 0
          %s631 = smul.addr %s34, 3
          %s632 = sadd.s32 %s628, %s631
          %s633 = smul.addr %s632, 4
          %s634 = scalar_lea.hbm %s7, %s633
          %s636 = sshll.u32 %s614, 4
          %s637 = int_to_ptr.vmem [resolvable:$true] %s636
          %s638 = sshll.u32 %s634, 4
          %s639 = int_to_ptr.hbm [resolvable:$true] %s638
          %641 = dma.vmem_to_hbm [thread:$0]  %s637, 192, %s639, %s611
        $region56: #{tpu_custom_call.1} parent=47 // pred_fallthru
          _
        // Predicated region
        $region57: #{tpu_custom_call.1} parent=47 // pred_check
          %p642 = pneg %p244
        $region58: #{tpu_custom_call.1} parent=47 // pred_check_branch
          %644 = sbr.rel (%p642) target = $region60
        $region59: #{tpu_custom_call.1} parent=47 // pred_region
          %s645 = smul.u32 3, %s35
          %647 = vsyncadd %s616, 0
          %s648 = smul.addr %s34, 3
          %s649 = sadd.s32 %s645, %s648
          %s650 = smul.addr %s649, 4
          %s651 = scalar_lea.hbm %s8, %s650
          %s653 = sshll.u32 %s619, 4
          %s654 = int_to_ptr.vmem [resolvable:$true] %s653
          %s655 = sshll.u32 %s651, 4
          %s656 = int_to_ptr.hbm [resolvable:$true] %s655
          %658 = dma.vmem_to_hbm [thread:$0]  %s654, 192, %s656, %s616
        $region60: #{tpu_custom_call.1} parent=47 // pred_fallthru
          _
        // Predicated region
        $region61: #{tpu_custom_call.1} parent=47 // pred_check
          %p659 = pneg %p272
        $region62: #{tpu_custom_call.1} parent=47 // pred_check_branch
          %661 = sbr.rel (%p659) target = $region64
        $region63: #{tpu_custom_call.1} parent=47 // pred_region
          %s662 = smul.u32 3, %s35
          %664 = vsyncadd %s621, 0
          %s665 = smul.addr %s34, 6
          %s666 = sadd.s32 %s662, %s665
          %s667 = smul.addr %s666, 4
          %s668 = scalar_lea.hbm %s9, %s667
          %s669 = sshll.u32 %s624, 4
          %s670 = int_to_ptr.vmem [resolvable:$true] %s669
          %s671 = sshll.u32 %s668, 4
          %s672 = int_to_ptr.hbm [resolvable:$true] %s671
          %677 = dma.vmem_to_hbm [thread:$0]  %s670, 384, %s672, %s621, 192, 192, 12
        $region64: #{tpu_custom_call.1} parent=47 // pred_fallthru
          _
      $region48: #{tpu_custom_call.1} parent=5 // pred_fallthru
        _
      %p678 = scmp.le.s32.totalorder 2, %s25
      // Predicated region
      $region65: #{tpu_custom_call.1} parent=5 // pred_check
        %p679 = pneg %p678
      $region66: #{tpu_custom_call.1} parent=5 // pred_check_branch
        %681 = sbr.rel (%p679) target = $region68
      $region67: #{tpu_custom_call.1} parent=5 // pred_region
        %s682 = ssub.s32 %s25, 2
        // Predicated region
        $region69: #{tpu_custom_call.1} parent=67 // pred_check
          %p683 = pneg %p222
        $region70: #{tpu_custom_call.1} parent=67 // pred_check_branch
          %685 = sbr.rel (%p683) target = $region72
        $region71: #{tpu_custom_call.1} parent=67 // pred_region
          %s686 = sand.u32 %s207, 1
          %s687 = scalar_lea.sflag [#allocation4], %s686
          %s688 = sand.u32 %s207, 1
          %s689 = smul.addr %s688, 12
          %s690 = scalar_lea.vmem [#allocation5], %s689
          %692 = dma.done %s687, 192
        $region72: #{tpu_custom_call.1} parent=67 // pred_fallthru
          _
        // Predicated region
        $region73: #{tpu_custom_call.1} parent=67 // pred_check
          %p693 = pneg %p250
        $region74: #{tpu_custom_call.1} parent=67 // pred_check_branch
          %695 = sbr.rel (%p693) target = $region76
        $region75: #{tpu_custom_call.1} parent=67 // pred_region
          %s696 = sand.u32 %s31, 1
          %s697 = scalar_lea.sflag [#allocation7], %s696
          %s698 = sand.u32 %s235, 1
          %s699 = smul.addr %s698, 12
          %s700 = scalar_lea.vmem [#allocation6], %s699
          %702 = dma.done %s697, 192
        $region76: #{tpu_custom_call.1} parent=67 // pred_fallthru
          _
        // Predicated region
        $region77: #{tpu_custom_call.1} parent=67 // pred_check
          %p703 = pneg %p278
        $region78: #{tpu_custom_call.1} parent=67 // pred_check_branch
          %705 = sbr.rel (%p703) target = $region80
        $region79: #{tpu_custom_call.1} parent=67 // pred_region
          %s706 = sand.u32 %s31, 1
          %s707 = scalar_lea.sflag [#allocation7], %s706
          %s708 = sand.u32 %s263, 1
          %s709 = smul.addr %s708, 24
          %s710 = scalar_lea.vmem [#allocation8], %s709
          %712 = dma.done %s707, 384
        $region80: #{tpu_custom_call.1} parent=67 // pred_fallthru
          _
      $region68: #{tpu_custom_call.1} parent=5 // pred_fallthru
        _
    $region6: #{tpu_custom_call.1} parent=1 // loop_footer
      %s29 = sadd.s32 1, %s25
    $region7: #{tpu_custom_call.1} parent=1 // loop_footer_branch
      %24 = sbr.rel target = $region3
    $region8: #{tpu_custom_call.1} parent=1 // loop_exit
      _
    %713 = vsyncpa [#allocation3], 1
    %s714 = scalar_lea.sflag [#allocation3], 1
    %715 = vsyncpa %s714, 1
    %716 = vsyncpa [#allocation4], 1
    %s717 = scalar_lea.sflag [#allocation4], 1
    %718 = vsyncpa %s717, 1
    %719 = vsyncpa [#allocation7], 1
    %s720 = scalar_lea.sflag [#allocation7], 1
    %721 = vsyncpa %s720, 1

</llo_original>
